<compile_context>
chip_gen: v7x
topology: tpu7x:2x2x1
jax: 0.10.0
libtpu: 0.0.40
codegen_flags: <defaults>
</compile_context>

<pallas_src>
import functools
import math

import jax
import jax.numpy as jnp
from jax import lax
from jax.experimental import pallas as pl
from jax.experimental.pallas import tpu as pltpu

EPS_NORM = 1e-12  # torch.nn.functional.normalize eps


def _round_up(x, m):
    return ((x + m - 1) // m) * m


def _pick_tile(n, candidates):
    for t in candidates:
        if n % t == 0:
            return t
    return n


def _pick_tm(n_pad):
    # Prefer the largest row tile that still leaves >= 2 row blocks so the
    # "parallel" axis can shard across both TensorCores on v7x.
    for t in (1024, 512, 256, 128):
        if n_pad % t == 0 and n_pad // t >= 2:
            return t
    return 128


# ---------------- row L2 normalization (F.normalize, dim=1) -----------------
def _l2norm_kernel(x_ref, o_ref):
    x = x_ref[...]
    ssq = jnp.sum(x * x, axis=1, keepdims=True)
    # 1 / max(||x||, eps), one EUP rsqrt per row (matches torch semantics).
    inv = lax.rsqrt(jnp.maximum(ssq, EPS_NORM * EPS_NORM))
    o_ref[...] = (x * inv).astype(o_ref.dtype)   # bf16 emitted at the producer


def _l2_normalize(x, out_dtype):
    n, c = x.shape
    tm = _pick_tile(n, (256, 128))
    return pl.pallas_call(
        _l2norm_kernel,
        out_shape=jax.ShapeDtypeStruct((n, c), out_dtype),
        grid=(n // tm,),
        in_specs=[pl.BlockSpec((tm, c), lambda i: (i, 0))],
        out_specs=pl.BlockSpec((tm, c), lambda i: (i, 0)),
        compiler_params=pltpu.CompilerParams(
            dimension_semantics=("parallel",)),
    )(x)


# ------------------------------- main kernel --------------------------------
def _punce_kernel(scal_ref, zr_ref, zc_ref, prow_ref, vrow_ref, self_ref,
                  psum_ref, o_ref, esum_scr, *, inv_temp, diag_corr,
                  inv_1p_pi):
    c = pl.program_id(1)
    nc = pl.num_programs(1)

    @pl.when(c == 0)
    def _init():
        esum_scr[...] = jnp.zeros_like(esum_scr)

    # S[i, j] = <row_i, col_j> / T  (feature axis contracted directly; bf16
    # operands -> native single-pass MXU, f32 accumulation).
    s = lax.dot_general(zr_ref[...], zc_ref[...], (((1,), (1,)), ((), ())),
                        preferred_element_type=jnp.float32) * inv_temp
    e = jnp.exp(s)                                   # (tm, tn) f32

    # Lane-dense accumulation: add the tn // 128 lane groups into a (tm, 128)
    # scratch with VPU adds only; the cross-lane reduce is deferred to the
    # finalize branch (one XLU reduce per ROW block instead of per tile).
    acc = esum_scr[...]
    tn = e.shape[1]
    for g in range(tn // 128):
        acc = acc + e[:, g * 128:(g + 1) * 128]
    esum_scr[...] = acc

    @pl.when(c == nc - 1)
    def _finalize():
        n_p = scal_ref[0]          # num labeled
        inv_np_m1 = scal_ref[1]    # 1 / (n_p - 1)   (0 if n_p <= 1)
        pi_over_np = scal_ref[2]   # pi / n_p        (0 if n_p == 0)
        p_i = prow_ref[...]        # (tm, 1) 1.0 if row is a labeled positive
        v_i = vrow_ref[...]        # (tm, 1) 1.0 if row is real (not padding)

        # sum_{j != i, j valid} exp(S_ij):
        #   diag term is exp(1/T) (self-sim == 1 after L2 norm) and every
        #   padded column contributes exp(0) == 1 exactly -> both removed by
        #   the constant diag_corr.  (No max-subtraction: |S| <= 1/T; fine for
        #   any reasonable temperature.)
        rowsum = jnp.sum(esum_scr[...], axis=1, keepdims=True) - diag_corr
        logz = jnp.log(jnp.maximum(rowsum, 1e-30))   # clamp keeps padded rows finite

        # L_ij = logz_i - S_ij (j != i), L_ii = 0.
        row_p = logz * (n_p - p_i) - (psum_ref[...] - p_i * inv_temp)
        row_self = logz - self_ref[...]
        risk_p = row_p * inv_np_m1
        risk_u = (row_self + pi_over_np * row_p) * inv_1p_pi
        contrib = p_i * risk_p + (1.0 - p_i) * risk_u
        o_ref[...] = jnp.where(v_i > 0.0, contrib, 0.0)


def punce_loss(z, z_aug, labels, *, temperature=0.5, class_prior=0.5,
               use_bf16_matmul=True):
    """Pallas implementation of PUinfoNCELoss.forward (loss_fn='puNCE')."""
    z = jnp.asarray(z, jnp.float32)
    z_aug = jnp.asarray(z_aug, jnp.float32)
    bsz, feat = z.shape
    n = 2 * bsz
    n_pad = _round_up(n, 128)
    c_pad = _round_up(feat, 128)

    compute_dtype = jnp.bfloat16 if use_bf16_matmul else jnp.float32
    itemsize = 2 if use_bf16_matmul else 4
    inv_temp = 1.0 / float(temperature)
    pi = float(class_prior)

    # ---- tile selection + VMEM budget (v7x: 64 MiB physical VMEM) ----
    tm = _pick_tm(n_pad)
    tn = _pick_tile(n_pad, (512, 256, 128))

    def _vmem_estimate(tm_, tn_):
        big = 2 * (tm_ + tn_) * c_pad * itemsize        # double-buffered row/col
        small = (2 * 5 + 1) * tm_ * 128 * 4             # per-row streams + scratch
        return big + small

    budget = 36 << 20
    while _vmem_estimate(tm, tn) > budget and tn > 128:
        tn //= 2
    while _vmem_estimate(tm, tn) > budget and tm > 128:
        tm //= 2
    vmem_limit = int(min(48 << 20, max(16 << 20, _vmem_estimate(tm, tn) + (8 << 20))))

    # ---- glue: concat + zero-pad, normalize (emits compute_dtype) ----
    zz = jnp.concatenate([z, z_aug], axis=0)                      # (N, C)
    zz = jnp.pad(zz, ((0, n_pad - n), (0, c_pad - feat)))         # (Np, Cp)
    zn = _l2_normalize(zz, compute_dtype)
    znf = zn.astype(jnp.float32)

    # per-row self-augmentation similarity <zn_i, zn_{i +/- bsz}> / T
    s01 = jnp.sum(znf[:bsz] * znf[bsz:n], axis=1) * inv_temp      # (bsz,)
    selfsim = jnp.pad(jnp.concatenate([s01, s01]), (0, n_pad - n))

    lab2 = jnp.concatenate([labels, labels]).astype(jnp.int32)
    p = (lab2 == 1).astype(jnp.float32)                           # (N,)
    p_pad = jnp.pad(p, (0, n_pad - n))
    v_pad = jnp.pad(jnp.ones((n,), jnp.float32), (0, n_pad - n))

    # psum_i = sum_{j in P} S_ij  computed as a matvec (p-weighted feature sum)
    w = p_pad @ znf                                               # (Cp,)
    psum = (znf @ w) * inv_temp                                   # (Np,)

    n_p = jnp.sum(p)
    # TODO(synk): num_labeled == 0 (sscl fallback), num_labeled == 1, and the
    #             'puNCE_soft' / 'puNCE_PP' variants are not implemented.
    scalars = jnp.stack([
        n_p,
        jnp.where(n_p > 1.0, 1.0 / (n_p - 1.0), 0.0),
        jnp.where(n_p > 0.0, pi / n_p, 0.0),
    ]).astype(jnp.float32)

    kern = functools.partial(
        _punce_kernel,
        inv_temp=float(inv_temp),
        diag_corr=float(math.exp(inv_temp)) + float(n_pad - n),
        inv_1p_pi=float(1.0 / (1.0 + pi)))

    contrib = pl.pallas_call(
        kern,
        out_shape=jax.ShapeDtypeStruct((n_pad, 1), jnp.float32),
        grid=(n_pad // tm, n_pad // tn),
        in_specs=[
            pl.BlockSpec(memory_space=pltpu.MemorySpace.SMEM),   # scalars (3,)
            pl.BlockSpec((tm, c_pad), lambda r, c: (r, 0)),      # zn rows
            pl.BlockSpec((tn, c_pad), lambda r, c: (c, 0)),      # zn cols
            pl.BlockSpec((tm, 1), lambda r, c: (r, 0)),          # p   (rows)
            pl.BlockSpec((tm, 1), lambda r, c: (r, 0)),          # valid (rows)
            pl.BlockSpec((tm, 1), lambda r, c: (r, 0)),          # self-sim
            pl.BlockSpec((tm, 1), lambda r, c: (r, 0)),          # psum
        ],
        out_specs=pl.BlockSpec((tm, 1), lambda r, c: (r, 0)),
        scratch_shapes=[pltpu.VMEM((tm, 128), jnp.float32)],
        compiler_params=pltpu.CompilerParams(
            dimension_semantics=("parallel", "arbitrary"),
            vmem_limit_bytes=vmem_limit),
    )(scalars, zn, zn,
      p_pad.reshape(n_pad, 1), v_pad.reshape(n_pad, 1),
      selfsim.reshape(n_pad, 1), psum.reshape(n_pad, 1))

    return jnp.sum(contrib) / jnp.float32(n)


# ----------------------------- pure-JAX reference ---------------------------
def punce_loss_ref(z, z_aug, labels, temp=0.5, pi=0.5):
    """Pure-JAX reference mirroring the PyTorch module (loss_fn='puNCE')."""
    zz = jnp.concatenate([z, z_aug], axis=0).astype(jnp.float32)
    zn = zz / jnp.maximum(
        jnp.sqrt(jnp.sum(zz * zz, axis=1, keepdims=True)), EPS_NORM)
    S = zn @ zn.T / temp
    N = S.shape[0]
    off = ~jnp.eye(N, dtype=bool)
    E = jnp.exp(S) * off
    P = E / E.sum(axis=1, keepdims=True)
    L = jnp.where(off, -jnp.log(jnp.where(off, P, 1.0)), 0.0)
    lab2 = jnp.concatenate([labels, labels])
    p = (lab2 == 1).astype(jnp.float32)
    n_p = p.sum()
    bsz = N // 2
    idx = jnp.arange(N)
    aug = (jnp.abs(idx[:, None] - idx[None, :]) == bsz).astype(jnp.float32)
    row_p = (L * p[None, :]).sum(axis=1)
    row_self = (L * aug).sum(axis=1)
    risk_p = row_p / (n_p - 1.0)
    risk_u = (row_self + pi * row_p / n_p) / (1.0 + pi)
    return jnp.mean(p * risk_p + (1.0 - p) * risk_u)


if __name__ == "__main__":
    key = jax.random.PRNGKey(0)
    k1, k2 = jax.random.split(key)
    batch, feat = 8, 32
    z = jax.random.normal(k1, (batch, feat), dtype=jnp.float32)
    z_aug = jax.random.normal(k2, (batch, feat), dtype=jnp.float32)
    # deterministic PU labels: mix of positives (1) and unlabeled (0)
    labels = jnp.array([1, 0, 1, 0, 1, 0, 0, 1], dtype=jnp.int32)

    ref = punce_loss_ref(z, z_aug, labels, temp=0.5, pi=0.5)

    # default: bf16 MXU path (looser tolerance due to bf16 rounding of S)
    loss_bf16 = jax.block_until_ready(punce_loss(z, z_aug, labels))
    assert jnp.allclose(loss_bf16, ref, atol=5e-2, rtol=5e-2), (loss_bf16, ref)

    # f32 path (tight tolerance)
    loss_f32 = jax.block_until_ready(
        punce_loss(z, z_aug, labels, use_bf16_matmul=False))
    assert jnp.allclose(loss_f32, ref, atol=2e-3, rtol=2e-3), (loss_f32, ref)

    print("KERNEL_OK")
</pallas_src>

<mosaic_0001>
module attributes {stable_mosaic.version = 11 : i64} {
  func.func @_l2norm_kernel(%arg0: i32, %arg1: memref<128x128xf32, #tpu.memory_space<vmem>>, %arg2: memref<128x128xbf16, #tpu.memory_space<vmem>>) attributes {dimension_semantics = [#tpu.dimension_semantics<parallel>], iteration_bounds = array<i64: 1>, scalar_prefetch = 0 : i64, scratch_operands = 0 : i64, tpu.core_type = #tpu.core_type<tc>, window_params = [{transform_indices = @transform_0, window_bounds = array<i64: 128, 128>}, {transform_indices = @transform_1, window_bounds = array<i64: 128, 128>}]} {
    %c0 = arith.constant 0 : index
    %c0_0 = arith.constant 0 : index
    %0 = vector.load %arg1[%c0, %c0_0] : memref<128x128xf32, #tpu.memory_space<vmem>>, vector<128x128xf32>
    %1 = arith.mulf %0, %0 : vector<128x128xf32>
    %cst = arith.constant dense<0.000000e+00> : vector<128xf32>
    %2 = vector.multi_reduction <add>, %1, %cst [1] : vector<128x128xf32> to vector<128xf32>
    %3 = vector.shape_cast %2 : vector<128xf32> to vector<128x1xf32>
    %cst_1 = arith.constant 1.000000e-24 : f32
    %4 = vector.broadcast %cst_1 : f32 to vector<128x1xf32>
    %5 = arith.maximumf %3, %4 : vector<128x1xf32>
    %6 = math.rsqrt %5 : vector<128x1xf32>
    %7 = vector.broadcast %6 : vector<128x1xf32> to vector<128x128xf32>
    %8 = arith.mulf %0, %7 : vector<128x128xf32>
    %9 = arith.truncf %8 : vector<128x128xf32> to vector<128x128xbf16>
    %c0_2 = arith.constant 0 : index
    %c0_3 = arith.constant 0 : index
    %10 = vector.load %arg2[%c0_2, %c0_3] : memref<128x128xbf16, #tpu.memory_space<vmem>>, vector<128x128xbf16>
    tpu.vector_store %arg2[%c0_2, %c0_3], %9 {strides = array<i32>} : memref<128x128xbf16, #tpu.memory_space<vmem>>, vector<128x128xbf16>,
    return
  }
  func.func @transform_0(%arg0: i32) -> (i32, i32) {
    %c0_i32 = arith.constant 0 : i32
    %c0_i32_0 = arith.constant 0 : i32
    return %arg0, %c0_i32 : i32, i32
  }
  func.func @transform_1(%arg0: i32) -> (i32, i32) {
    %c0_i32 = arith.constant 0 : i32
    %c0_i32_0 = arith.constant 0 : i32
    return %arg0, %c0_i32 : i32, i32
  }
}

</mosaic_0001>

<llo_original>
// kernel: tpu_custom_call.1
$region0: #{tpu_custom_call.1}
  #allocation0 [shape = 'u32[]', space=smem, size = 0x4, offset = 0x4, fixed_abs, tag = 'smem constant byte address 0x4 - core index']
  #allocation1 [shape = 'u32[144,128]{1,0:T(1,128)}', space=vmem, size = 0x12000, scoped, tag = 'internal scratch']
  %s0 = inlined_call_operand.hbm [shape: f32[128,128], index: 0, kind: input, shape index: {}]
  %s1 = inlined_call_operand.hbm [shape: bf16[128,128], index: 1, kind: output, shape index: {}]
  %s2 = sld [smem:[#allocation0]]
  $region18: #{tpu_custom_call.1} parent=0
    _
  %s4 = ssub.s32 1, %s2
  %s5 = scalar_select 0, %s4, %s2
  $region1: #{tpu_custom_call.1} parent=0
    #allocation2 [shape = 'u8[65536]{0}', space=vmem, size = 0x10000, scoped, tag = 'input window, operand 0, single buffered']
    #allocation3 [shape = 's32[1]{0}', space=sflag, size = 0x4, scoped, tag = 'scoped memory for tpu_custom_call.1']
    #allocation4 [shape = 's32[1]{0}', space=sflag, size = 0x4, scoped, tag = 'scoped memory for tpu_custom_call.1']
    #allocation5 [shape = 'u8[32768]{0}', space=vmem, size = 0x8000, scoped, tag = 'output window, operand 0, single buffered']
    %6 = vsyncpa [#allocation3], 0
    %7 = vsyncpa [#allocation4], 0
    // Predicated region
    $region2: #{tpu_custom_call.1} parent=1 // pred_check
      _
    $region3: #{tpu_custom_call.1} parent=1 // pred_check_branch
      %9 = sbr.rel (0) target = $region5
    $region4: #{tpu_custom_call.1} parent=1 // pred_region
      %s11 = ssub.s32 2048, 2048
      %12 = vsyncadd [#allocation3], %s11
      %s13 = sshll.u32 [#allocation2], 4
      %s14 = int_to_ptr.vmem [resolvable:$true] %s13
      %19 = dma.hbm_to_vmem [thread:$0]  %s0, 2048, %s14, [#allocation3], 128, 128, 8
    $region5: #{tpu_custom_call.1} parent=1 // pred_fallthru
      _
    // Predicated region
    $region6: #{tpu_custom_call.1} parent=1 // pred_check
      _
    $region7: #{tpu_custom_call.1} parent=1 // pred_check_branch
      %21 = sbr.rel (0) target = $region9
    $region8: #{tpu_custom_call.1} parent=1 // pred_region
      %22 = dma.done [#allocation3], 2048
    $region9: #{tpu_custom_call.1} parent=1 // pred_fallthru
      _
    %v23 = vld [vmem:[#allocation2] sm:$0xff]
    %v24 = vld [vmem:[#allocation2 + $0x8] sm:$0xff]
    %v25 = vld [vmem:[#allocation2 + $0x10] sm:$0xff]
    %v26 = vld [vmem:[#allocation2 + $0x18] sm:$0xff]
    %v27 = vld [vmem:[#allocation2 + $0x20] sm:$0xff]
    %v28 = vld [vmem:[#allocation2 + $0x28] sm:$0xff]
    %v29 = vld [vmem:[#allocation2 + $0x30] sm:$0xff]
    %v30 = vld [vmem:[#allocation2 + $0x38] sm:$0xff]
    %v31 = vld [vmem:[#allocation2 + $0x40] sm:$0xff]
    %v32 = vld [vmem:[#allocation2 + $0x48] sm:$0xff]
    %v33 = vld [vmem:[#allocation2 + $0x50] sm:$0xff]
    %v34 = vld [vmem:[#allocation2 + $0x58] sm:$0xff]
    %v35 = vld [vmem:[#allocation2 + $0x60] sm:$0xff]
    %v36 = vld [vmem:[#allocation2 + $0x68] sm:$0xff]
    %v37 = vld [vmem:[#allocation2 + $0x70] sm:$0xff]
    %v38 = vld [vmem:[#allocation2 + $0x78] sm:$0xff]
    %v39 = vmul.f32 %v23, %v23
    %v40 = vmul.f32 %v24, %v24
    %v41 = vmul.f32 %v25, %v25
    %v42 = vmul.f32 %v26, %v26
    %v43 = vmul.f32 %v27, %v27
    %v44 = vmul.f32 %v28, %v28
    %v45 = vmul.f32 %v29, %v29
    %v46 = vmul.f32 %v30, %v30
    %v47 = vmul.f32 %v31, %v31
    %v48 = vmul.f32 %v32, %v32
    %v49 = vmul.f32 %v33, %v33
    %v50 = vmul.f32 %v34, %v34
    %v51 = vmul.f32 %v35, %v35
    %v52 = vmul.f32 %v36, %v36
    %v53 = vmul.f32 %v37, %v37
    %v54 = vmul.f32 %v38, %v38
    %55 = vadd.xlane.f32.xlu0 %v39
    %v56 = vpop.xlane.xlu0 %55
    %57 = vadd.xlane.f32.xlu0 %v40
    %v58 = vpop.xlane.xlu0 %57
    %59 = vadd.xlane.f32.xlu0 %v41
    %v60 = vpop.xlane.xlu0 %59
    %61 = vadd.xlane.f32.xlu0 %v42
    %v62 = vpop.xlane.xlu0 %61
    %63 = vadd.xlane.f32.xlu0 %v43
    %v64 = vpop.xlane.xlu0 %63
    %65 = vadd.xlane.f32.xlu0 %v44
    %v66 = vpop.xlane.xlu0 %65
    %67 = vadd.xlane.f32.xlu0 %v45
    %v68 = vpop.xlane.xlu0 %67
    %69 = vadd.xlane.f32.xlu0 %v46
    %v70 = vpop.xlane.xlu0 %69
    %71 = vadd.xlane.f32.xlu0 %v47
    %v72 = vpop.xlane.xlu0 %71
    %73 = vadd.xlane.f32.xlu0 %v48
    %v74 = vpop.xlane.xlu0 %73
    %75 = vadd.xlane.f32.xlu0 %v49
    %v76 = vpop.xlane.xlu0 %75
    %77 = vadd.xlane.f32.xlu0 %v50
    %v78 = vpop.xlane.xlu0 %77
    %79 = vadd.xlane.f32.xlu0 %v51
    %v80 = vpop.xlane.xlu0 %79
    %81 = vadd.xlane.f32.xlu0 %v52
    %v82 = vpop.xlane.xlu0 %81
    %83 = vadd.xlane.f32.xlu0 %v53
    %v84 = vpop.xlane.xlu0 %83
    %85 = vadd.xlane.f32.xlu0 %v54
    %v86 = vpop.xlane.xlu0 %85
    %v87 = vmax.f32 %v56, 1e-24
    %v88 = vmax.f32 %v58, 1e-24
    %v89 = vmax.f32 %v60, 1e-24
    %v90 = vmax.f32 %v62, 1e-24
    %v91 = vmax.f32 %v64, 1e-24
    %v92 = vmax.f32 %v66, 1e-24
    %v93 = vmax.f32 %v68, 1e-24
    %v94 = vmax.f32 %v70, 1e-24
    %v95 = vmax.f32 %v72, 1e-24
    %v96 = vmax.f32 %v74, 1e-24
    %v97 = vmax.f32 %v76, 1e-24
    %v98 = vmax.f32 %v78, 1e-24
    %v99 = vmax.f32 %v80, 1e-24
    %v100 = vmax.f32 %v82, 1e-24
    %v101 = vmax.f32 %v84, 1e-24
    %v102 = vmax.f32 %v86, 1e-24
    %v103 = vrsqrt.pop %v87
    %v104 = vrsqrt.pop %v88
    %v105 = vrsqrt.pop %v89
    %v106 = vrsqrt.pop %v90
    %v107 = vrsqrt.pop %v91
    %v108 = vrsqrt.pop %v92
    %v109 = vrsqrt.pop %v93
    %v110 = vrsqrt.pop %v94
    %v111 = vrsqrt.pop %v95
    %v112 = vrsqrt.pop %v96
    %v113 = vrsqrt.pop %v97
    %v114 = vrsqrt.pop %v98
    %v115 = vrsqrt.pop %v99
    %v116 = vrsqrt.pop %v100
    %v117 = vrsqrt.pop %v101
    %v118 = vrsqrt.pop %v102
    %v119 = vmul.f32 %v23, %v103
    %v120 = vmul.f32 %v24, %v104
    %v121 = vmul.f32 %v25, %v105
    %v122 = vmul.f32 %v26, %v106
    %v123 = vmul.f32 %v27, %v107
    %v124 = vmul.f32 %v28, %v108
    %v125 = vmul.f32 %v29, %v109
    %v126 = vmul.f32 %v30, %v110
    %v127 = vmul.f32 %v31, %v111
    %v128 = vmul.f32 %v32, %v112
    %v129 = vmul.f32 %v33, %v113
    %v130 = vmul.f32 %v34, %v114
    %v131 = vmul.f32 %v35, %v115
    %v132 = vmul.f32 %v36, %v116
    %v133 = vmul.f32 %v37, %v117
    %v134 = vmul.f32 %v38, %v118
    %v135 = vpack.c.bf16 %v120, %v119
    %v136 = vpack.c.bf16 %v122, %v121
    %v137 = vpack.c.bf16 %v124, %v123
    %v138 = vpack.c.bf16 %v126, %v125
    %v139 = vpack.c.bf16 %v128, %v127
    %v140 = vpack.c.bf16 %v130, %v129
    %v141 = vpack.c.bf16 %v132, %v131
    %v142 = vpack.c.bf16 %v134, %v133
    %v151 = vunpack.c.l.b16 %v135
    %v152 = vunpack.c.h.b16 %v135
    %v153 = vunpack.c.l.b16 %v136
    %v154 = vunpack.c.h.b16 %v136
    %v155 = vunpack.c.l.b16 %v137
    %v156 = vunpack.c.h.b16 %v137
    %v157 = vunpack.c.l.b16 %v138
    %v158 = vunpack.c.h.b16 %v138
    %v159 = vunpack.c.l.b16 %v139
    %v160 = vunpack.c.h.b16 %v139
    %v161 = vunpack.c.l.b16 %v140
    %v162 = vunpack.c.h.b16 %v140
    %v163 = vunpack.c.l.b16 %v141
    %v164 = vunpack.c.h.b16 %v141
    %v165 = vunpack.c.l.b16 %v142
    %v166 = vunpack.c.h.b16 %v142
    %v167 = vpack.c.b16 %v151, %v151
    %v168 = vpack.c.b16 %v152, %v152
    %v169 = vpack.c.b16 %v153, %v153
    %v170 = vpack.c.b16 %v154, %v154
    %v171 = vpack.c.b16 %v155, %v155
    %v172 = vpack.c.b16 %v156, %v156
    %v173 = vpack.c.b16 %v157, %v157
    %v174 = vpack.c.b16 %v158, %v158
    %v175 = vpack.c.b16 %v159, %v159
    %v176 = vpack.c.b16 %v160, %v160
    %v177 = vpack.c.b16 %v161, %v161
    %v178 = vpack.c.b16 %v162, %v162
    %v179 = vpack.c.b16 %v163, %v163
    %v180 = vpack.c.b16 %v164, %v164
    %v181 = vpack.c.b16 %v165, %v165
    %v182 = vpack.c.b16 %v166, %v166
    %199 = vst [vmem:[#allocation5] sm:$0xf] %v167
    %200 = vst [vmem:[#allocation5 + $0x4] sm:$0xf] %v168
    %201 = vst [vmem:[#allocation5 + $0x8] sm:$0xf] %v169
    %202 = vst [vmem:[#allocation5 + $0xc] sm:$0xf] %v170
    %203 = vst [vmem:[#allocation5 + $0x10] sm:$0xf] %v171
    %204 = vst [vmem:[#allocation5 + $0x14] sm:$0xf] %v172
    %205 = vst [vmem:[#allocation5 + $0x18] sm:$0xf] %v173
    %206 = vst [vmem:[#allocation5 + $0x1c] sm:$0xf] %v174
    %207 = vst [vmem:[#allocation5 + $0x20] sm:$0xf] %v175
    %208 = vst [vmem:[#allocation5 + $0x24] sm:$0xf] %v176
    %209 = vst [vmem:[#allocation5 + $0x28] sm:$0xf] %v177
    %210 = vst [vmem:[#allocation5 + $0x2c] sm:$0xf] %v178
    %211 = vst [vmem:[#allocation5 + $0x30] sm:$0xf] %v179
    %212 = vst [vmem:[#allocation5 + $0x34] sm:$0xf] %v180
    %213 = vst [vmem:[#allocation5 + $0x38] sm:$0xf] %v181
    %214 = vst [vmem:[#allocation5 + $0x3c] sm:$0xf] %v182
    // Predicated region
    $region10: #{tpu_custom_call.1} parent=1 // pred_check
      _
    $region11: #{tpu_custom_call.1} parent=1 // pred_check_branch
      %216 = sbr.rel (0) target = $region13
    $region12: #{tpu_custom_call.1} parent=1 // pred_region
      %s218 = ssub.s32 1024, 1024
      %219 = vsyncadd [#allocation4], %s218
      %s220 = sshll.u32 [#allocation5], 4
      %s221 = int_to_ptr.vmem [resolvable:$true] %s220
      %226 = dma.vmem_to_hbm [thread:$0]  %s221, 1024, %s1, [#allocation4], 64, 64, 4
    $region13: #{tpu_custom_call.1} parent=1 // pred_fallthru
      _
    // Predicated region
    $region14: #{tpu_custom_call.1} parent=1 // pred_check
      _
    $region15: #{tpu_custom_call.1} parent=1 // pred_check_branch
      %228 = sbr.rel (0) target = $region17
    $region16: #{tpu_custom_call.1} parent=1 // pred_region
      %229 = dma.done [#allocation4], 1024
    $region17: #{tpu_custom_call.1} parent=1 // pred_fallthru
      _
    %230 = vsyncpa [#allocation3], 1
    %231 = vsyncpa [#allocation4], 1

</llo_original>
